<compile_context>
chip_gen: v7x
topology: tpu7x:2x2x1
jax: 0.10.0
libtpu: 0.0.40
codegen_flags: <defaults>
</compile_context>

<pallas_src>
import functools

import jax
import jax.numpy as jnp
import numpy as np
from jax import lax
from jax.experimental import pallas as pl
from jax.experimental.pallas import tpu as pltpu


# ----------------------------- Pallas kernel --------------------------------
def _complex_conv_kernel(w_ref, b_ref, p_ref, o_ref):
    """One M-tile of the fused complex conv (single MXU matmul + bias).

    w_ref : (O2p, K2p)  bf16  combined weights [[wr, -wi], [wi, wr]] (zero-padded)
    b_ref : (O2p, 1)    f32   combined bias    [b_r - b_i ; b_r + b_i]
    p_ref : (K2p, tm)   bf16  combined im2col patches [pr ; pi], M on lanes
    o_ref : (O2p, tm)   f32   output rows [real ; imag], M on lanes (lane-dense)
    """
    acc = jnp.dot(w_ref[...], p_ref[...], preferred_element_type=jnp.float32)
    o_ref[...] = acc + b_ref[...]


# ------------------------------- glue / wrapper ------------------------------
def _round_up(x, m):
    return ((x + m - 1) // m) * m


def _choose_tm(M, K2p, O2p):
    """Largest M-tile that (a) fits a conservative VMEM budget (v7x: 64 MiB
    physical / 32 MiB scoped) and (b) leaves >= 2 grid steps for megacore."""
    budget = 12 * 1024 * 1024
    for tm in (1024, 512, 256):
        vmem = 2 * tm * (2 * K2p + 4 * O2p)  # double-buffered bf16 patches + f32 out
        if vmem <= budget and _round_up(M, tm) // tm >= 2:
            return tm
    return 128


def _im2col_kmajor(x, kh, kw, stride, padding):
    """x: (N, C, H, W) -> (C*kh*kw, N*Ho*Wo); K ordered (c, ky, kx) == OIHW flatten."""
    N, C, H, W = x.shape
    xp = jnp.pad(x, ((0, 0), (0, 0), (padding, padding), (padding, padding)))
    Ho = (H + 2 * padding - kh) // stride + 1
    Wo = (W + 2 * padding - kw) // stride + 1
    cols = []
    for ky in range(kh):
        for kx in range(kw):
            cols.append(xp[:, :, ky:ky + stride * Ho:stride,
                           kx:kx + stride * Wo:stride])       # (N, C, Ho, Wo)
    p = jnp.stack(cols, axis=2)               # (N, C, kh*kw, Ho, Wo)
    p = p.transpose(1, 2, 0, 3, 4)            # (C, kh*kw, N, Ho, Wo)
    return p.reshape(C * kh * kw, N * Ho * Wo), Ho, Wo


@functools.partial(jax.jit, static_argnames=("kernel_size", "stride", "padding"))
def complex_conv2d(x, w_real, w_imag, b_real, b_imag,
                   *, kernel_size, stride=1, padding=0):
    """x: (N, 2, C, H, W) -> (N, 2, O, Ho, Wo)   (matches the PyTorch module)."""
    assert x.ndim == 5 and x.shape[1] == 2, "Expected (N,2,C,H,W) format."
    N, _, C, H, W = x.shape
    O = w_real.shape[0]
    kh = kw = kernel_size
    K = C * kh * kw

    # im2col in bf16 (halves patch-slab HBM traffic; MXU is bf16-native).
    # TODO(synk): implicit im2col (a kh*kw reduction grid axis DMAing shifted
    # input windows) would avoid materializing the kh*kw-x patch slab in HBM.
    r = x[:, 0].astype(jnp.bfloat16)
    i = x[:, 1].astype(jnp.bfloat16)
    pr, Ho, Wo = _im2col_kmajor(r, kh, kw, stride, padding)   # (K, M)
    pi, _, _ = _im2col_kmajor(i, kh, kw, stride, padding)     # (K, M)
    M = N * Ho * Wo

    # Fused complex operands:  Wc @ [pr ; pi] = [real ; imag].
    wr = w_real.reshape(O, K)
    wi = w_imag.reshape(O, K)
    wc = jnp.concatenate(
        [jnp.concatenate([wr, -wi], axis=1),
         jnp.concatenate([wi, wr], axis=1)], axis=0)            # (2O, 2K) f32
    bc = jnp.concatenate([b_real - b_imag, b_real + b_imag])    # (2O,)    f32
    pc = jnp.concatenate([pr, pi], axis=0)                      # (2K, M)  bf16

    # Pad: contraction 2K -> mult of 128, rows 2O -> mult of 8, M -> mult of tm.
    K2p = _round_up(2 * K, 128)
    O2p = _round_up(2 * O, 8)
    tm = _choose_tm(M, K2p, O2p)
    M_pad = _round_up(M, tm)

    wc = jnp.pad(wc, ((0, O2p - 2 * O), (0, K2p - 2 * K))).astype(jnp.bfloat16)
    bc = jnp.pad(bc, (0, O2p - 2 * O)).reshape(O2p, 1)
    pc = jnp.pad(pc, ((0, K2p - 2 * K), (0, M_pad - M)))

    grid = (M_pad // tm,)
    out = pl.pallas_call(
        _complex_conv_kernel,
        out_shape=jax.ShapeDtypeStruct((O2p, M_pad), jnp.float32),
        grid_spec=pltpu.PrefetchScalarGridSpec(
            num_scalar_prefetch=0,
            grid=grid,
            in_specs=[
                pl.BlockSpec((O2p, K2p), lambda m: (0, 0)),   # combined weights
                pl.BlockSpec((O2p, 1), lambda m: (0, 0)),     # combined bias
                pl.BlockSpec((K2p, tm), lambda m: (0, m)),    # patches (M on lanes)
            ],
            out_specs=pl.BlockSpec((O2p, tm), lambda m: (0, m)),
        ),
        compiler_params=pltpu.CompilerParams(
            dimension_semantics=("parallel",),
            vmem_limit_bytes=32 * 1024 * 1024),
    )(wc, bc, pc)

    # (2O, M) -> (N, 2, O, Ho, Wo)
    out = out[:2 * O, :M].reshape(2, O, N, Ho, Wo)
    return out.transpose(2, 0, 1, 3, 4)


# -------------------------- deterministic parameter init ---------------------
def init_complex_conv_params(key, in_channels, out_channels, kernel_size):
    """Mimics ComplexInitializer(method='kaiming'): Rayleigh magnitude, uniform phase."""
    kh = kw = kernel_size
    wshape = (out_channels, in_channels, kh, kw)      # PyTorch OIHW
    fan_in = in_channels * kh * kw
    scale = 1.0 / np.sqrt(fan_in)

    k_mag, k_ph, k_br, k_bi = jax.random.split(key, 4)
    u = jax.random.uniform(k_mag, wshape, jnp.float32, minval=1e-7, maxval=1.0)
    magnitude = scale * jnp.sqrt(-2.0 * jnp.log(u))                 # Rayleigh(scale)
    phase = jax.random.uniform(k_ph, wshape, jnp.float32,
                               minval=-np.pi, maxval=np.pi)
    w_real = magnitude * jnp.cos(phase)
    w_imag = magnitude * jnp.sin(phase)

    # PyTorch Conv2d default bias init: U(-1/sqrt(fan_in), 1/sqrt(fan_in))
    bound = 1.0 / np.sqrt(fan_in)
    b_real = jax.random.uniform(k_br, (out_channels,), jnp.float32, -bound, bound)
    b_imag = jax.random.uniform(k_bi, (out_channels,), jnp.float32, -bound, bound)
    return w_real, w_imag, b_real, b_imag


# ----------------------------------- main ------------------------------------
if __name__ == "__main__":
    key = jax.random.PRNGKey(0)
    k_x, k_p = jax.random.split(key)

    # Small shapes consistent with the module: (N, 2, C, H, W)
    N, C, H, W = 2, 4, 16, 16
    out_channels, kernel_size, stride, padding = 8, 3, 1, 1

    x = jax.random.normal(k_x, (N, 2, C, H, W), dtype=jnp.float32)
    w_real, w_imag, b_real, b_imag = init_complex_conv_params(
        k_p, C, out_channels, kernel_size)

    out = complex_conv2d(x, w_real, w_imag, b_real, b_imag,
                         kernel_size=kernel_size, stride=stride, padding=padding)
    out = jax.block_until_ready(out)

    # ------------------------- reference checks ------------------------------
    def conv(inp, w, b):
        y = lax.conv_general_dilated(
            inp, w, window_strides=(stride, stride),
            padding=[(padding, padding), (padding, padding)],
            dimension_numbers=("NCHW", "OIHW", "NCHW"))
        return y + b[None, :, None, None]

    # (1) Exact-semantics reference: same bf16-rounded MXU operands, f32 accum.
    rb = x[:, 0].astype(jnp.bfloat16).astype(jnp.float32)
    ib = x[:, 1].astype(jnp.bfloat16).astype(jnp.float32)
    wrb = w_real.astype(jnp.bfloat16).astype(jnp.float32)
    wib = w_imag.astype(jnp.bfloat16).astype(jnp.float32)
    ref_bf = jnp.stack([conv(rb, wrb, b_real) - conv(ib, wib, b_imag),
                        conv(ib, wrb, b_real) + conv(rb, wib, b_imag)], axis=1)

    # (2) Full-f32 module semantics (loose tolerance: bf16 MXU operands).
    r32, i32 = x[:, 0], x[:, 1]
    ref_f32 = jnp.stack([conv(r32, w_real, b_real) - conv(i32, w_imag, b_imag),
                         conv(i32, w_real, b_real) + conv(r32, w_imag, b_imag)],
                        axis=1)

    assert out.shape == (N, 2, out_channels, H, W), out.shape
    np.testing.assert_allclose(np.asarray(out), np.asarray(ref_bf),
                               rtol=2e-3, atol=2e-3)
    np.testing.assert_allclose(np.asarray(out), np.asarray(ref_f32),
                               rtol=5e-2, atol=5e-2)
    print("KERNEL_OK")
</pallas_src>

<mosaic_0001>
module attributes {stable_mosaic.version = 11 : i64} {
  func.func @_complex_conv_kernel(%arg0: i32, %arg1: memref<16x128xbf16, #tpu.memory_space<vmem>>, %arg2: memref<16x1xf32, #tpu.memory_space<vmem>>, %arg3: memref<128x256xbf16, #tpu.memory_space<vmem>>, %arg4: memref<16x256xf32, #tpu.memory_space<vmem>>) attributes {dimension_semantics = [#tpu.dimension_semantics<parallel>], iteration_bounds = array<i64: 2>, scalar_prefetch = 0 : i64, scratch_operands = 0 : i64, tpu.core_type = #tpu.core_type<tc>, window_params = [{pipeline_mode = #tpu.pipeline_mode<synchronous>, transform_indices = @transform_0, window_bounds = array<i64: 16, 128>}, {pipeline_mode = #tpu.pipeline_mode<synchronous>, transform_indices = @transform_1, window_bounds = array<i64: 16, 1>}, {transform_indices = @transform_2, window_bounds = array<i64: 128, 256>}, {transform_indices = @transform_3, window_bounds = array<i64: 16, 256>}]} {
    %c0 = arith.constant 0 : index
    %c0_0 = arith.constant 0 : index
    %0 = vector.load %arg1[%c0, %c0_0] : memref<16x128xbf16, #tpu.memory_space<vmem>>, vector<16x128xbf16>
    %c0_1 = arith.constant 0 : index
    %c0_2 = arith.constant 0 : index
    %1 = vector.load %arg3[%c0_1, %c0_2] : memref<128x256xbf16, #tpu.memory_space<vmem>>, vector<128x256xbf16>
    %cst = arith.constant dense<0.000000e+00> : vector<16x256xf32>
    %2 = tpu.matmul %0, %1, %cst {dimension_numbers = #tpu.dot_dimension_numbers<[1], [0], [0], [1], [0, 0, 1, 1], [], []>} : vector<16x128xbf16>, vector<128x256xbf16>, vector<16x256xf32> -> vector<16x256xf32>
    %c0_3 = arith.constant 0 : index
    %c0_4 = arith.constant 0 : index
    %3 = vector.load %arg2[%c0_3, %c0_4] : memref<16x1xf32, #tpu.memory_space<vmem>>, vector<16x1xf32>
    %4 = vector.broadcast %3 : vector<16x1xf32> to vector<16x256xf32>
    %5 = arith.addf %2, %4 : vector<16x256xf32>
    %c0_5 = arith.constant 0 : index
    %c0_6 = arith.constant 0 : index
    %6 = vector.load %arg4[%c0_5, %c0_6] : memref<16x256xf32, #tpu.memory_space<vmem>>, vector<16x256xf32>
    tpu.vector_store %arg4[%c0_5, %c0_6], %5 {strides = array<i32>} : memref<16x256xf32, #tpu.memory_space<vmem>>, vector<16x256xf32>,
    return
  }
  func.func @transform_0(%arg0: i32) -> (i32, i32) {
    %c0_i32 = arith.constant 0 : i32
    %c0_i32_0 = arith.constant 0 : i32
    %c0_i32_1 = arith.constant 0 : i32
    return %c0_i32, %c0_i32_0 : i32, i32
  }
  func.func @transform_1(%arg0: i32) -> (i32, i32) {
    %c0_i32 = arith.constant 0 : i32
    %c0_i32_0 = arith.constant 0 : i32
    %c0_i32_1 = arith.constant 0 : i32
    return %c0_i32, %c0_i32_0 : i32, i32
  }
  func.func @transform_2(%arg0: i32) -> (i32, i32) {
    %c0_i32 = arith.constant 0 : i32
    %c0_i32_0 = arith.constant 0 : i32
    return %c0_i32, %arg0 : i32, i32
  }
  func.func @transform_3(%arg0: i32) -> (i32, i32) {
    %c0_i32 = arith.constant 0 : i32
    %c0_i32_0 = arith.constant 0 : i32
    return %c0_i32, %arg0 : i32, i32
  }
}

</mosaic_0001>

<llo_original>
// kernel: complex_conv2d.1
$region0: #{complex_conv2d.1}
  #allocation0 [shape = 'u32[]', space=smem, size = 0x4, offset = 0x4, fixed_abs, tag = 'smem constant byte address 0x4 - core index']
  #allocation1 [shape = 'u32[144,128]{1,0:T(1,128)}', space=vmem, size = 0x12000, scoped, tag = 'internal scratch']
  %s0 = inlined_call_operand.vmem [shape: bf16[16,128], index: 0, kind: input, shape index: {}]
  %s1 = inlined_call_operand.vmem [shape: f32[16,1], index: 1, kind: input, shape index: {}]
  %s2 = inlined_call_operand.vmem [shape: bf16[128,512], index: 2, kind: input, shape index: {}]
  %s3 = inlined_call_operand.vmem [shape: f32[16,512], index: 3, kind: output, shape index: {}]
  %s4 = sld [smem:[#allocation0]]
  $region102: #{complex_conv2d.1} parent=0
    _
  %s6 = ssub.s32 1, %s4
  %s7 = scalar_select 0, %s6, %s4
  $region1: #{complex_conv2d.1} parent=0
    #allocation2 [shape = 'u8[131072]{0}', space=vmem, size = 0x20000, scoped, tag = 'input window, operand 2']
    #allocation3 [shape = 'u8[32768]{0}', space=vmem, size = 0x8000, scoped, tag = 'output window, operand 0']
    loop: start=0, step=1, limit=4
    $region2: #{complex_conv2d.1} parent=1 // loop_pre_header
      _
    $region3: #{complex_conv2d.1} parent=1 // loop_header
      %s9 = sphi 0, %s13
      %p10 = scmp.ge.s32.totalorder %s9, 4
      %s17 = sphi 0, %s17
      %s19 = sphi 0, %s17
      %s20 = sphi 0, %s19
      %s34 = sphi 0, %s20
      %s38 = sphi 0, %s38
      %s40 = sphi 0, %s38
      %s41 = sphi 0, %s40
      %s55 = sphi 0, %s41
      %s61 = sphi 0, %s63
      %s64 = sphi 0, %s61
      %s65 = sphi 0, %s64
      %s81 = sphi 0, %s65
      %s87 = sphi 0, %s89
      %s90 = sphi 0, %s87
      %s91 = sphi 0, %s90
      %s107 = sphi 0, %s91
    $region4: #{complex_conv2d.1} parent=1 // loop_header_branch
      %12 = sbr.rel (%p10) target = $region8
    $region5: #{complex_conv2d.1} parent=1 // loop_body
      %s14 = ssub.s32 %s9, 1
      %s15 = ssub.s32 %s9, 2
      %s16 = sadd.s32 %s9, 1
      %s18 = sadd.s32 %s17, 1
      %p21 = scmp.eq.s32.totalorder %s9, 1
      %p22 = scmp.ne.s32.totalorder %s17, %s19
      %p23 = scmp.eq.s32.totalorder %s9, 0
      %p24 = por %p22, %p23
      %p25 = scmp.ne.s32.totalorder %s17, %s19
      %p26 = scmp.eq.s32.totalorder %s14, 1
      %p27 = por %p25, %p26
      %p28 = scmp.ne.s32.totalorder %s19, %s20
      %p29 = scmp.eq.s32.totalorder %s14, 0
      %p30 = por %p28, %p29
      %p31 = scmp.ne.s32.totalorder %s19, %s20
      %p32 = scmp.eq.s32.totalorder %s15, 1
      %p33 = por %p31, %p32
      %p35 = scmp.ne.s32.totalorder %s20, %s34
      %p36 = scmp.eq.s32.totalorder %s15, 0
      %p37 = por %p35, %p36
      %s39 = sadd.s32 %s38, 1
      %p42 = scmp.eq.s32.totalorder %s9, 1
      %p43 = scmp.ne.s32.totalorder %s38, %s40
      %p44 = scmp.eq.s32.totalorder %s9, 0
      %p45 = por %p43, %p44
      %p46 = scmp.ne.s32.totalorder %s38, %s40
      %p47 = scmp.eq.s32.totalorder %s14, 1
      %p48 = por %p46, %p47
      %p49 = scmp.ne.s32.totalorder %s40, %s41
      %p50 = scmp.eq.s32.totalorder %s14, 0
      %p51 = por %p49, %p50
      %p52 = scmp.ne.s32.totalorder %s40, %s41
      %p53 = scmp.eq.s32.totalorder %s15, 1
      %p54 = por %p52, %p53
      %p56 = scmp.ne.s32.totalorder %s41, %s55
      %p57 = scmp.eq.s32.totalorder %s15, 0
      %p58 = por %p56, %p57
      %s59 = ssub.s32 %s9, %s16
      %p60 = scmp.eq.s32.totalorder %s59, 0
      %s62 = sadd.s32 %s61, 1
      %s63 = scalar_select %p60, %s61, %s62
      %p66 = pneg %p60
      %p67 = scmp.eq.s32.totalorder %s9, 1
      %p68 = por %p66, %p67
      %p69 = scmp.ne.s32.totalorder %s61, %s64
      %p70 = scmp.eq.s32.totalorder %s9, 0
      %p71 = por %p69, %p70
      %p72 = scmp.ne.s32.totalorder %s61, %s64
      %p73 = scmp.eq.s32.totalorder %s14, 1
      %p74 = por %p72, %p73
      %p75 = scmp.ne.s32.totalorder %s64, %s65
      %p76 = scmp.eq.s32.totalorder %s14, 0
      %p77 = por %p75, %p76
      %p78 = scmp.ne.s32.totalorder %s64, %s65
      %p79 = scmp.eq.s32.totalorder %s15, 1
      %p80 = por %p78, %p79
      %p82 = scmp.ne.s32.totalorder %s65, %s81
      %p83 = scmp.eq.s32.totalorder %s15, 0
      %p84 = por %p82, %p83
      %s85 = ssub.s32 %s9, %s16
      %p86 = scmp.eq.s32.totalorder %s85, 0
      %s88 = sadd.s32 %s87, 1
      %s89 = scalar_select %p86, %s87, %s88
      %p92 = pneg %p86
      %p93 = scmp.eq.s32.totalorder %s9, 1
      %p94 = por %p92, %p93
      %p95 = scmp.ne.s32.totalorder %s87, %s90
      %p96 = scmp.eq.s32.totalorder %s9, 0
      %p97 = por %p95, %p96
      %p98 = scmp.ne.s32.totalorder %s87, %s90
      %p99 = scmp.eq.s32.totalorder %s14, 1
      %p100 = por %p98, %p99
      %p101 = scmp.ne.s32.totalorder %s90, %s91
      %p102 = scmp.eq.s32.totalorder %s14, 0
      %p103 = por %p101, %p102
      %p104 = scmp.ne.s32.totalorder %s90, %s91
      %p105 = scmp.eq.s32.totalorder %s15, 1
      %p106 = por %p104, %p105
      %p108 = scmp.ne.s32.totalorder %s91, %s107
      %p109 = scmp.eq.s32.totalorder %s15, 0
      %p110 = por %p108, %p109
      %p111 = scmp.le.s32.totalorder 1, %s9
      %p112 = scmp.lt.s32.totalorder %s9, 3
      %p113 = pnand %p111, %p112
      %p114 = pneg %p113
      // Predicated region
      $region9: #{complex_conv2d.1} parent=5 // pred_check
        _
      $region10: #{complex_conv2d.1} parent=5 // pred_check_branch
        %116 = sbr.rel (%p113) target = $region12
      $region11: #{complex_conv2d.1} parent=5 // pred_region
        %s117 = ssub.s32 %s9, 1
        // Predicated region
        $region13: #{complex_conv2d.1} parent=11 // pred_check
          %p118 = pneg %p30
        $region14: #{complex_conv2d.1} parent=11 // pred_check_branch
          %120 = sbr.rel (%p118) target = $region16
        $region15: #{complex_conv2d.1} parent=11 // pred_region
          _
        $region16: #{complex_conv2d.1} parent=11 // pred_fallthru
          _
        // Predicated region
        $region17: #{complex_conv2d.1} parent=11 // pred_check
          %p121 = pneg %p51
        $region18: #{complex_conv2d.1} parent=11 // pred_check_branch
          %123 = sbr.rel (%p121) target = $region20
        $region19: #{complex_conv2d.1} parent=11 // pred_region
          _
        $region20: #{complex_conv2d.1} parent=11 // pred_fallthru
          _
      $region12: #{complex_conv2d.1} parent=5 // pred_fallthru
        _
      %p124 = scmp.lt.s32.totalorder %s9, 2
      // Predicated region
      $region21: #{complex_conv2d.1} parent=5 // pred_check
        %p125 = pneg %p124
      $region22: #{complex_conv2d.1} parent=5 // pred_check_branch
        %127 = sbr.rel (%p125) target = $region24
      $region23: #{complex_conv2d.1} parent=5 // pred_region
        // Predicated region
        $region25: #{complex_conv2d.1} parent=23 // pred_check
          %p128 = pneg %p71
        $region26: #{complex_conv2d.1} parent=23 // pred_check_branch
          %130 = sbr.rel (%p128) target = $region28
        $region27: #{complex_conv2d.1} parent=23 // pred_region
          %s131 = sand.u32 %s61, 1
          %s132 = sand.u32 %s61, 1
          %s133 = smul.addr %s132, 128
          %s134 = scalar_lea.vmem [#allocation2], %s133
          %s135 = smul.u32 2, %s9
          %s136 = smul.addr %s135, 4
          %s137 = scalar_lea.vmem %s2, %s136
          // Predicated region
          $region29: #{complex_conv2d.1} parent=27 // pred_check
            _
          $region30: #{complex_conv2d.1} parent=27 // pred_check_branch
            %139 = sbr.rel (0) target = $region32
          $region31: #{complex_conv2d.1} parent=27 // pred_region
            // Predicated region
            $region33: #{complex_conv2d.1} parent=31 // pred_check
              _
            $region34: #{complex_conv2d.1} parent=31 // pred_check_branch
              %141 = sbr.rel (0) target = $region36
            $region35: #{complex_conv2d.1} parent=31 // pred_region
              // Predicated region
              $region48: #{complex_conv2d.1} parent=35 // pred_check
                _
              $region49: #{complex_conv2d.1} parent=35 // pred_check_branch
                %186 = sbr.rel (0) target = $region51
              $region50: #{complex_conv2d.1} parent=35 // pred_region
                loop: start=0, step=1, limit=1
                $region52: #{complex_conv2d.1} parent=50 // loop_pre_header
                  _
                $region53: #{complex_conv2d.1} parent=50 // loop_header
                  %s188 = sphi 0, %s192
                  %p189 = scmp.ge.s32.totalorder %s188, 1
                  %s193 = sphi %s137, %s137
                  %s194 = sphi %s134, %s134
                $region54: #{complex_conv2d.1} parent=50 // loop_header_branch
                  %191 = sbr.rel (%p189) target = $region58
                $region55: #{complex_conv2d.1} parent=50 // loop_body
                  %v195 = vld [vmem:[%s193] sm:$0xff]
                  %196 = vst [vmem:[%s194] sm:$0xff] %v195
                  %v197 = vld [vmem:[%s193 + $0x10] sm:$0xff]
                  %198 = vst [vmem:[%s194 + $0x8] sm:$0xff] %v197
                  %v199 = vld [vmem:[%s193 + $0x20] sm:$0xff]
                  %200 = vst [vmem:[%s194 + $0x10] sm:$0xff] %v199
                  %v201 = vld [vmem:[%s193 + $0x30] sm:$0xff]
                  %202 = vst [vmem:[%s194 + $0x18] sm:$0xff] %v201
                  %v203 = vld [vmem:[%s193 + $0x40] sm:$0xff]
                  %204 = vst [vmem:[%s194 + $0x20] sm:$0xff] %v203
                  %v205 = vld [vmem:[%s193 + $0x50] sm:$0xff]
                  %206 = vst [vmem:[%s194 + $0x28] sm:$0xff] %v205
                  %v207 = vld [vmem:[%s193 + $0x60] sm:$0xff]
                  %208 = vst [vmem:[%s194 + $0x30] sm:$0xff] %v207
                  %v209 = vld [vmem:[%s193 + $0x70] sm:$0xff]
                  %210 = vst [vmem:[%s194 + $0x38] sm:$0xff] %v209
                  %v211 = vld [vmem:[%s193 + $0x80] sm:$0xff]
                  %212 = vst [vmem:[%s194 + $0x40] sm:$0xff] %v211
                  %v213 = vld [vmem:[%s193 + $0x90] sm:$0xff]
                  %214 = vst [vmem:[%s194 + $0x48] sm:$0xff] %v213
                  %v215 = vld [vmem:[%s193 + $0xa0] sm:$0xff]
                  %216 = vst [vmem:[%s194 + $0x50] sm:$0xff] %v215
                  %v217 = vld [vmem:[%s193 + $0xb0] sm:$0xff]
                  %218 = vst [vmem:[%s194 + $0x58] sm:$0xff] %v217
                  %v219 = vld [vmem:[%s193 + $0xc0] sm:$0xff]
                  %220 = vst [vmem:[%s194 + $0x60] sm:$0xff] %v219
                  %v221 = vld [vmem:[%s193 + $0xd0] sm:$0xff]
                  %222 = vst [vmem:[%s194 + $0x68] sm:$0xff] %v221
                  %v223 = vld [vmem:[%s193 + $0xe0] sm:$0xff]
                  %224 = vst [vmem:[%s194 + $0x70] sm:$0xff] %v223
                  %v225 = vld [vmem:[%s193 + $0xf0] sm:$0xff]
                  %226 = vst [vmem:[%s194 + $0x78] sm:$0xff] %v225
                $region56: #{complex_conv2d.1} parent=50 // loop_footer
                  %s192 = sadd.s32 1, %s188
                $region57: #{complex_conv2d.1} parent=50 // loop_footer_branch
                  %187 = sbr.rel target = $region53
                $region58: #{complex_conv2d.1} parent=50 // loop_exit
                  _
              $region51: #{complex_conv2d.1} parent=35 // pred_fallthru
                _
              // Predicated region
              $region59: #{complex_conv2d.1} parent=35 // pred_check
                _
              $region60: #{complex_conv2d.1} parent=35 // pred_check_branch
                %228 = sbr.rel target = $region62
              $region61: #{complex_conv2d.1} parent=35 // pred_region
                _
              $region62: #{complex_conv2d.1} parent=35 // pred_fallthru
                _
            $region36: #{complex_conv2d.1} parent=31 // pred_fallthru
              _
            // Predicated region
            $region37: #{complex_conv2d.1} parent=31 // pred_check
              _
            $region38: #{complex_conv2d.1} parent=31 // pred_check_branch
              %143 = sbr.rel target = $region40
            $region39: #{complex_conv2d.1} parent=31 // pred_region
              loop: start=0, step=1, limit=1
              $region41: #{complex_conv2d.1} parent=39 // loop_pre_header
                _
              $region42: #{complex_conv2d.1} parent=39 // loop_header
                %s146 = sphi 0, %s150
                %p147 = scmp.ge.s32.totalorder %s146, 1
                %s151 = sphi %s137, %s137
                %s152 = sphi %s134, %s134
              $region43: #{complex_conv2d.1} parent=39 // loop_header_branch
                %149 = sbr.rel (%p147) target = $region47
              $region44: #{complex_conv2d.1} parent=39 // loop_body
                %v153 = vld [vmem:[%s151] sm:$0xff]
                %154 = vst [vmem:[%s152] sm:$0xff] %v153
                %v155 = vld [vmem:[%s151 + $0x10] sm:$0xff]
                %156 = vst [vmem:[%s152 + $0x8] sm:$0xff] %v155
                %v157 = vld [vmem:[%s151 + $0x20] sm:$0xff]
                %158 = vst [vmem:[%s152 + $0x10] sm:$0xff] %v157
                %v159 = vld [vmem:[%s151 + $0x30] sm:$0xff]
                %160 = vst [vmem:[%s152 + $0x18] sm:$0xff] %v159
                %v161 = vld [vmem:[%s151 + $0x40] sm:$0xff]
                %162 = vst [vmem:[%s152 + $0x20] sm:$0xff] %v161
                %v163 = vld [vmem:[%s151 + $0x50] sm:$0xff]
                %164 = vst [vmem:[%s152 + $0x28] sm:$0xff] %v163
                %v165 = vld [vmem:[%s151 + $0x60] sm:$0xff]
                %166 = vst [vmem:[%s152 + $0x30] sm:$0xff] %v165
                %v167 = vld [vmem:[%s151 + $0x70] sm:$0xff]
                %168 = vst [vmem:[%s152 + $0x38] sm:$0xff] %v167
                %v169 = vld [vmem:[%s151 + $0x80] sm:$0xff]
                %170 = vst [vmem:[%s152 + $0x40] sm:$0xff] %v169
                %v171 = vld [vmem:[%s151 + $0x90] sm:$0xff]
                %172 = vst [vmem:[%s152 + $0x48] sm:$0xff] %v171
                %v173 = vld [vmem:[%s151 + $0xa0] sm:$0xff]
                %174 = vst [vmem:[%s152 + $0x50] sm:$0xff] %v173
                %v175 = vld [vmem:[%s151 + $0xb0] sm:$0xff]
                %176 = vst [vmem:[%s152 + $0x58] sm:$0xff] %v175
                %v177 = vld [vmem:[%s151 + $0xc0] sm:$0xff]
                %178 = vst [vmem:[%s152 + $0x60] sm:$0xff] %v177
                %v179 = vld [vmem:[%s151 + $0xd0] sm:$0xff]
                %180 = vst [vmem:[%s152 + $0x68] sm:$0xff] %v179
                %v181 = vld [vmem:[%s151 + $0xe0] sm:$0xff]
                %182 = vst [vmem:[%s152 + $0x70] sm:$0xff] %v181
                %v183 = vld [vmem:[%s151 + $0xf0] sm:$0xff]
                %184 = vst [vmem:[%s152 + $0x78] sm:$0xff] %v183
              $region45: #{complex_conv2d.1} parent=39 // loop_footer
                %s150 = sadd.s32 1, %s146
              $region46: #{complex_conv2d.1} parent=39 // loop_footer_branch
                %145 = sbr.rel target = $region42
              $region47: #{complex_conv2d.1} parent=39 // loop_exit
                _
            $region40: #{complex_conv2d.1} parent=31 // pred_fallthru
              _
          $region32: #{complex_conv2d.1} parent=27 // pred_fallthru
            _
          %229 = vnop
        $region28: #{complex_conv2d.1} parent=23 // pred_fallthru
          _
      $region24: #{complex_conv2d.1} parent=5 // pred_fallthru
        _
      %p230 = scmp.le.s32.totalorder 1, %s9
      %p231 = scmp.lt.s32.totalorder %s9, 3
      %p232 = pnand %p230, %p231
      %p233 = pneg %p232
      // Predicated region
      $region63: #{complex_conv2d.1} parent=5 // pred_check
        _
      $region64: #{complex_conv2d.1} parent=5 // pred_check_branch
        %235 = sbr.rel (%p232) target = $region66
      $region65: #{complex_conv2d.1} parent=5 // pred_region
        %s236 = ssub.s32 %s9, 1
        %s237 = sand.u32 %s64, 1
        %s238 = sand.u32 %s64, 1
        %s239 = smul.addr %s238, 128
        %s240 = scalar_lea.vmem [#allocation2], %s239
        // Predicated region
        $region67: #{complex_conv2d.1} parent=65 // pred_check
          %p241 = pneg %p77
        $region68: #{complex_conv2d.1} parent=65 // pred_check_branch
          %243 = sbr.rel (%p241) target = $region70
        $region69: #{complex_conv2d.1} parent=65 // pred_region
          _
        $region70: #{complex_conv2d.1} parent=65 // pred_fallthru
          _
        %p244 = pneg %p30
        %p245 = pneg %p27
        %p246 = pneg %p51
        %p247 = pneg %p48
        %s248 = sand.u32 %s64, 1
        %s249 = sand.u32 %s64, 1
        %s250 = smul.addr %s249, 128
        %s251 = scalar_lea.vmem [#allocation2], %s250
        %p252 = pneg %p77
        %p253 = pneg %p74
        %p254 = pneg %p103
        %p255 = pneg %p100
        %s256 = sand.u32 %s90, 1
        %s257 = sand.u32 %s90, 1
        %s258 = smul.addr %s257, 32
        %s259 = scalar_lea.vmem [#allocation3], %s258
        %s260 = smul.u32 2, %s14
        %s261 = smul.u32 2, %s14
        %v263 = vld [vmem:[%s0] sm:$0xf]
        %v264 = vld [vmem:[%s0 + $0x4] sm:$0xf]
        %v265 = vld [vmem:[%s240] sm:$0xff]
        %v266 = vld [vmem:[%s240 + $0x8] sm:$0xff]
        %v267 = vld [vmem:[%s240 + $0x10] sm:$0xff]
        %v268 = vld [vmem:[%s240 + $0x18] sm:$0xff]
        %v269 = vld [vmem:[%s240 + $0x20] sm:$0xff]
        %v270 = vld [vmem:[%s240 + $0x28] sm:$0xff]
        %v271 = vld [vmem:[%s240 + $0x30] sm:$0xff]
        %v272 = vld [vmem:[%s240 + $0x38] sm:$0xff]
        %v273 = vld [vmem:[%s240 + $0x40] sm:$0xff]
        %v274 = vld [vmem:[%s240 + $0x48] sm:$0xff]
        %v275 = vld [vmem:[%s240 + $0x50] sm:$0xff]
        %v276 = vld [vmem:[%s240 + $0x58] sm:$0xff]
        %v277 = vld [vmem:[%s240 + $0x60] sm:$0xff]
        %v278 = vld [vmem:[%s240 + $0x68] sm:$0xff]
        %v279 = vld [vmem:[%s240 + $0x70] sm:$0xff]
        %v280 = vld [vmem:[%s240 + $0x78] sm:$0xff]
        %v281 = vld [vmem:[%s1] sm:$0xff]
        %v282 = vld [vmem:[%s1 + $0x8] sm:$0xff]
        %284 = vset.pattern.permute.xlu0 0
        %285 = vperm.xlu0 %284, %v281
        %v286 = vpop.permute.xlu0 %285
        %289 = vset.pattern.permute.xlu0 0
        %290 = vperm.xlu0 %289, %v282
        %v291 = vpop.permute.xlu0 %290
        %v295 = vunpack.c.l.b16 %v263
        %v296 = vunpack.c.l.b16 %v264
        %v297 = vpack.c.b16 %v296, %v295
        %v315 = vunpack.c.l.b16 %v265
        %v316 = vunpack.c.h.b16 %v265
        %v317 = vunpack.c.l.b16 %v266
        %v318 = vunpack.c.h.b16 %v266
        %v319 = vunpack.c.l.b16 %v267
        %v320 = vunpack.c.h.b16 %v267
        %v321 = vunpack.c.l.b16 %v268
        %v322 = vunpack.c.h.b16 %v268
        %v323 = vunpack.c.l.b16 %v269
        %v324 = vunpack.c.h.b16 %v269
        %v325 = vunpack.c.l.b16 %v270
        %v326 = vunpack.c.h.b16 %v270
        %v327 = vunpack.c.l.b16 %v271
        %v328 = vunpack.c.h.b16 %v271
        %v329 = vunpack.c.l.b16 %v272
        %v330 = vunpack.c.h.b16 %v272
        %v331 = vunpack.c.l.b16 %v273
        %v332 = vunpack.c.h.b16 %v273
        %v333 = vunpack.c.l.b16 %v274
        %v334 = vunpack.c.h.b16 %v274
        %v335 = vunpack.c.l.b16 %v275
        %v336 = vunpack.c.h.b16 %v275
        %v337 = vunpack.c.l.b16 %v276
        %v338 = vunpack.c.h.b16 %v276
        %v339 = vunpack.c.l.b16 %v277
        %v340 = vunpack.c.h.b16 %v277
        %v341 = vunpack.c.l.b16 %v278
        %v342 = vunpack.c.h.b16 %v278
        %v343 = vunpack.c.l.b16 %v279
        %v344 = vunpack.c.h.b16 %v279
        %v345 = vunpack.c.l.b16 %v280
        %v346 = vunpack.c.h.b16 %v280
        %v347 = vpack.c.b16 %v317, %v315
        %v348 = vpack.c.b16 %v318, %v316
        %v349 = vpack.c.b16 %v321, %v319
        %v350 = vpack.c.b16 %v322, %v320
        %v351 = vpack.c.b16 %v325, %v323
        %v352 = vpack.c.b16 %v326, %v324
        %v353 = vpack.c.b16 %v329, %v327
        %v354 = vpack.c.b16 %v330, %v328
        %v355 = vpack.c.b16 %v333, %v331
        %v356 = vpack.c.b16 %v334, %v332
        %v357 = vpack.c.b16 %v337, %v335
        %v358 = vpack.c.b16 %v338, %v336
        %v359 = vpack.c.b16 %v341, %v339
        %v360 = vpack.c.b16 %v342, %v340
        %v361 = vpack.c.b16 %v345, %v343
        %v362 = vpack.c.b16 %v346, %v344
        %379 = vmatprep.subr.bf16.mxu0 %v348
        %380 = vmatpush1.bf16.msra.mxu0 %v347
        %381 = vmatprep.subr.bf16.mxu0 %v350
        %382 = vmatpush1.bf16.msra.mxu0 %v349
        %383 = vmatprep.subr.bf16.mxu0 %v352
        %384 = vmatpush1.bf16.msra.mxu0 %v351
        %385 = vmatprep.subr.bf16.mxu0 %v354
        %386 = vmatpush1.bf16.msra.mxu0 %v353
        %387 = vmatprep.subr.bf16.mxu0 %v356
        %388 = vmatpush1.bf16.msra.mxu0 %v355
        %389 = vmatprep.subr.bf16.mxu0 %v358
        %390 = vmatpush1.bf16.msra.mxu0 %v357
        %391 = vmatprep.subr.bf16.mxu0 %v360
        %392 = vmatpush1.bf16.msra.mxu0 %v359
        %393 = vmatprep.subr.bf16.mxu0 %v362
        %394 = vmatpush1.bf16.msra.mxu0 %v361
        %395 = vmatprep.subr.bf16.mxu0 0
        %396 = vmatpush1.bf16.msra.mxu0 0
        %397 = vmatprep.subr.bf16.mxu0 0
        %398 = vmatpush1.bf16.msra.mxu0 0
        %399 = vmatprep.subr.bf16.mxu0 0
        %400 = vmatpush1.bf16.msra.mxu0 0
        %401 = vmatprep.subr.bf16.mxu0 0
        %402 = vmatpush1.bf16.msra.mxu0 0
        %403 = vmatprep.subr.bf16.mxu0 0
        %404 = vmatpush1.bf16.msra.mxu0 0
        %405 = vmatprep.subr.bf16.mxu0 0
        %406 = vmatpush1.bf16.msra.mxu0 0
        %407 = vmatprep.subr.bf16.mxu0 0
        %408 = vmatpush1.bf16.msra.mxu0 0
        %409 = vmatprep.subr.bf16.mxu0 0
        %410 = vmatpush1.bf16.msra.mxu0 0
        %411 = vmatprep.mubr.bf16.mxu0 0
        %412 = vmatmul.mubr.bf16.gmra.mrb[0].mxu0 %v297
        %v413 = vpop.f32.mrb[0].mxu0
        %v414 = vadd.f32 %v286, %v413
        %v415 = vpop.f32.mrb[0].mxu0
        %v416 = vadd.f32 %v286, %v415
        %v417 = vpop.f32.mrb[0].mxu0
        %v418 = vadd.f32 %v291, %v417
        %v419 = vpop.f32.mrb[0].mxu0
        %v420 = vadd.f32 %v291, %v419
        %421 = vdwg.mxu0
        %422 = vst [vmem:[%s259] sm:$0xff] %v414
        %423 = vst [vmem:[%s259 + $0x8] sm:$0xff] %v416
        %424 = vst [vmem:[%s259 + $0x10] sm:$0xff] %v418
        %425 = vst [vmem:[%s259 + $0x18] sm:$0xff] %v420
        %s426 = sand.u32 %s90, 1
        %s427 = sand.u32 %s90, 1
        %s428 = smul.addr %s427, 32
        %s429 = scalar_lea.vmem [#allocation3], %s428
        // Predicated region
        $region71: #{complex_conv2d.1} parent=65 // pred_check
          %p430 = pneg %p100
        $region72: #{complex_conv2d.1} parent=65 // pred_check_branch
          %432 = sbr.rel (%p430) target = $region74
        $region73: #{complex_conv2d.1} parent=65 // pred_region
          %s433 = smul.u32 2, %s14
          %s434 = smul.addr %s433, 8
          %s435 = scalar_lea.vmem %s3, %s434
          // Predicated region
          $region75: #{complex_conv2d.1} parent=73 // pred_check
            _
          $region76: #{complex_conv2d.1} parent=73 // pred_check_branch
            %437 = sbr.rel (0) target = $region78
          $region77: #{complex_conv2d.1} parent=73 // pred_region
            // Predicated region
            $region79: #{complex_conv2d.1} parent=77 // pred_check
              _
            $region80: #{complex_conv2d.1} parent=77 // pred_check_branch
              %439 = sbr.rel (0) target = $region82
            $region81: #{complex_conv2d.1} parent=77 // pred_region
              loop: start=0, step=1, limit=1
              $region83: #{complex_conv2d.1} parent=81 // loop_pre_header
                _
              $region84: #{complex_conv2d.1} parent=81 // loop_header
                %s441 = sphi 0, %s445
                %p442 = scmp.ge.s32.totalorder %s441, 1
                %s446 = sphi %s429, %s429
                %s447 = sphi %s435, %s435
              $region85: #{complex_conv2d.1} parent=81 // loop_header_branch
                %444 = sbr.rel (%p442) target = $region89
              $region86: #{complex_conv2d.1} parent=81 // loop_body
                %v448 = vld [vmem:[%s446] sm:$0xff]
                %449 = vst [vmem:[%s447] sm:$0xff] %v448
                %v450 = vld [vmem:[%s446 + $0x8] sm:$0xff]
                %451 = vst [vmem:[%s447 + $0x8] sm:$0xff] %v450
                %v452 = vld [vmem:[%s446 + $0x10] sm:$0xff]
                %453 = vst [vmem:[%s447 + $0x20] sm:$0xff] %v452
                %v454 = vld [vmem:[%s446 + $0x18] sm:$0xff]
                %455 = vst [vmem:[%s447 + $0x28] sm:$0xff] %v454
              $region87: #{complex_conv2d.1} parent=81 // loop_footer
                %s445 = sadd.s32 1, %s441
              $region88: #{complex_conv2d.1} parent=81 // loop_footer_branch
                %440 = sbr.rel target = $region84
              $region89: #{complex_conv2d.1} parent=81 // loop_exit
                _
            $region82: #{complex_conv2d.1} parent=77 // pred_fallthru
              _
            // Predicated region
            $region90: #{complex_conv2d.1} parent=77 // pred_check
              _
            $region91: #{complex_conv2d.1} parent=77 // pred_check_branch
              %457 = sbr.rel target = $region93
            $region92: #{complex_conv2d.1} parent=77 // pred_region
              _
            $region93: #{complex_conv2d.1} parent=77 // pred_fallthru
              _
          $region78: #{complex_conv2d.1} parent=73 // pred_fallthru
            _
          %458 = vnop
        $region74: #{complex_conv2d.1} parent=65 // pred_fallthru
          _
      $region66: #{complex_conv2d.1} parent=5 // pred_fallthru
        _
      %p459 = scmp.le.s32.totalorder 2, %s9
      // Predicated region
      $region94: #{complex_conv2d.1} parent=5 // pred_check
        %p460 = pneg %p459
      $region95: #{complex_conv2d.1} parent=5 // pred_check_branch
        %462 = sbr.rel (%p460) target = $region97
      $region96: #{complex_conv2d.1} parent=5 // pred_region
        %s463 = ssub.s32 %s9, 2
        // Predicated region
        $region98: #{complex_conv2d.1} parent=96 // pred_check
          %p464 = pneg %p106
        $region99: #{complex_conv2d.1} parent=96 // pred_check_branch
          %466 = sbr.rel (%p464) target = $region101
        $region100: #{complex_conv2d.1} parent=96 // pred_region
          %s467 = sand.u32 %s91, 1
          %s468 = sand.u32 %s91, 1
          %s469 = smul.addr %s468, 32
          %s470 = scalar_lea.vmem [#allocation3], %s469
        $region101: #{complex_conv2d.1} parent=96 // pred_fallthru
          _
      $region97: #{complex_conv2d.1} parent=5 // pred_fallthru
        _
    $region6: #{complex_conv2d.1} parent=1 // loop_footer
      %s13 = sadd.s32 1, %s9
    $region7: #{complex_conv2d.1} parent=1 // loop_footer_branch
      %8 = sbr.rel target = $region3
    $region8: #{complex_conv2d.1} parent=1 // loop_exit
      _

</llo_original>
